<compile_context>
chip_gen: v7x
topology: tpu7x:2x2x1
jax: 0.10.0
libtpu: 0.0.40
codegen_flags: <defaults>
</compile_context>

<pallas_src>
import functools

import jax
import jax.numpy as jnp
from jax.experimental import pallas as pl
from jax.experimental.pallas import tpu as pltpu

LANE = 128


def _pad_to(n, m):
    return ((n + m - 1) // m) * m


# ---------------------------------------------------------------------------
# Fused kernel: per-batch conv (im2col matmul) + bias + ReLU + global avg
# pool; embedding + classifier matmuls finalized on the last grid step.
# ---------------------------------------------------------------------------
def fused_forward_kernel(p_ref, wc_ref, bc_ref, we_ref, be_ref,
                         wcls_ref, bcls_ref, emb_ref, logits_ref,
                         pooled_sc, *, HW):
    # p_ref    : (HW, Kp)   bf16  im2col patches for batch b
    # wc_ref   : (Kp, Cp)   bf16  conv weight (HWIO flattened, zero-padded)
    # bc_ref   : (1, Cp)    f32   conv bias
    # we_ref   : (Cp, Ep)   bf16  embedding weight (in, out) layout
    # be_ref   : (1, Ep)    f32   embedding bias
    # wcls_ref : (Ep, Np)   bf16  classifier weight (in, out) layout
    # bcls_ref : (1, Np)    f32   classifier bias
    # emb_ref  : (B, Ep)    f32   output (written on last step only)
    # logits_ref:(B, Np)    f32   output (written on last step only)
    # pooled_sc: (B, Cp)    f32   VMEM scratch, per-batch pooled features
    b = pl.program_id(0)

    # Conv as one K=9*Cin matmul on the MXU (bf16 operands, f32 accumulate).
    acc = jnp.dot(p_ref[...], wc_ref[...], preferred_element_type=jnp.float32)
    acc = jnp.maximum(acc + bc_ref[...], 0.0)                    # bias + ReLU

    # Global average pool for this batch: cross-sublane reduction (XLU).
    pooled_sc[pl.ds(b, 1), :] = (
        jnp.sum(acc, axis=0, keepdims=True) * jnp.float32(1.0 / HW))

    @pl.when(b == pl.num_programs(0) - 1)
    def _():
        pooled = pooled_sc[...].astype(jnp.bfloat16)             # (B, Cp)
        emb = (jnp.dot(pooled, we_ref[...],
                       preferred_element_type=jnp.float32) + be_ref[...])
        emb_ref[...] = emb
        logits_ref[...] = (jnp.dot(emb.astype(jnp.bfloat16), wcls_ref[...],
                                   preferred_element_type=jnp.float32)
                           + bcls_ref[...])


# ---------------------------------------------------------------------------
# Wrapper-side operand prep (im2col, lane padding, bf16 cast).
# ---------------------------------------------------------------------------
def _prep_operands(x_nchw, params):
    B, C, H, W = x_nchw.shape
    HW = H * W
    K = 9 * C
    Cout = params["conv_w"].shape[-1]
    EMB = params["emb_w"].shape[-1]
    NCL = params["cls_w"].shape[-1]

    Kp = _pad_to(K, LANE)
    Cp = _pad_to(Cout, LANE)
    Ep = _pad_to(EMB, LANE)
    Np = _pad_to(NCL, LANE)

    # NCHW -> NHWC, "same" pad, wrapper-side im2col (tiny tensors, XLA fuses).
    x = jnp.transpose(x_nchw, (0, 2, 3, 1))
    xp = jnp.pad(x, ((0, 0), (1, 1), (1, 1), (0, 0)))
    taps = [xp[:, dy:dy + H, dx:dx + W, :]
            for dy in range(3) for dx in range(3)]
    patches = jnp.concatenate(taps, axis=-1).reshape(B * HW, K)
    patches = jnp.pad(patches, ((0, 0), (0, Kp - K))).astype(jnp.bfloat16)

    wc = params["conv_w"].reshape(K, Cout)            # (dy, dx, cin) row-major
    wc = jnp.pad(wc, ((0, Kp - K), (0, Cp - Cout))).astype(jnp.bfloat16)
    bc = jnp.pad(params["conv_b"], ((0, 0), (0, Cp - Cout)))

    we = jnp.pad(params["emb_w"],
                 ((0, Cp - Cout), (0, Ep - EMB))).astype(jnp.bfloat16)
    be = jnp.pad(params["emb_b"], ((0, 0), (0, Ep - EMB)))

    wcls = jnp.pad(params["cls_w"],
                   ((0, Ep - EMB), (0, Np - NCL))).astype(jnp.bfloat16)
    bcls = jnp.pad(params["cls_b"], ((0, 0), (0, Np - NCL)))

    dims = dict(B=B, HW=HW, Kp=Kp, Cp=Cp, Ep=Ep, Np=Np, EMB=EMB, NCL=NCL)
    return (patches, wc, bc, we, be, wcls, bcls), dims


def _fused_call(operands, dims):
    B, HW, Kp, Cp, Ep, Np = (dims[k] for k in ("B", "HW", "Kp", "Cp", "Ep", "Np"))
    patches, wc, bc, we, be, wcls, bcls = operands
    kern = functools.partial(fused_forward_kernel, HW=HW)

    resident = lambda b: (0, 0)
    flops = int(2 * (B * HW * Kp * Cp + B * Cp * Ep + B * Ep * Np))
    bytes_accessed = int(2 * (B * HW * Kp + Kp * Cp + Cp * Ep + Ep * Np)  # bf16
                         + 4 * (Cp + Ep + Np)                              # biases
                         + 4 * (B * Ep + B * Np))                          # outputs

    emb_pad, logits_pad = pl.pallas_call(
        kern,
        out_shape=(jax.ShapeDtypeStruct((B, Ep), jnp.float32),
                   jax.ShapeDtypeStruct((B, Np), jnp.float32)),
        grid_spec=pltpu.PrefetchScalarGridSpec(
            num_scalar_prefetch=0,
            grid=(B,),
            in_specs=[
                pl.BlockSpec((HW, Kp), lambda b: (b, 0)),   # per-batch patches
                pl.BlockSpec((Kp, Cp), resident),           # conv weight
                pl.BlockSpec((1, Cp), resident),            # conv bias
                pl.BlockSpec((Cp, Ep), resident),           # embedding weight
                pl.BlockSpec((1, Ep), resident),            # embedding bias
                pl.BlockSpec((Ep, Np), resident),           # classifier weight
                pl.BlockSpec((1, Np), resident),            # classifier bias
            ],
            out_specs=(pl.BlockSpec((B, Ep), resident),
                       pl.BlockSpec((B, Np), resident)),
            scratch_shapes=[pltpu.VMEM((B, Cp), jnp.float32)],
        ),
        compiler_params=pltpu.CompilerParams(
            dimension_semantics=("arbitrary",),
            vmem_limit_bytes=32 * 1024 * 1024),
        cost_estimate=pl.CostEstimate(flops=flops, transcendentals=0,
                                      bytes_accessed=bytes_accessed),
    )(patches, wc, bc, we, be, wcls, bcls)
    return emb_pad, logits_pad


# ---------------------------------------------------------------------------
# Module-equivalent entry points
# ---------------------------------------------------------------------------
def embedding_model_conv_forward(x_nchw, params):
    """Mirrors EmbeddingModelConv.forward: backbone -> flatten -> embedding."""
    operands, dims = _prep_operands(x_nchw, params)
    emb_pad, _ = _fused_call(operands, dims)
    return emb_pad[:, :dims["EMB"]]


def embed_and_classify(x_nchw, params):
    """Mirrors EmbeddingModelConv.embed_and_classify."""
    operands, dims = _prep_operands(x_nchw, params)
    emb_pad, logits_pad = _fused_call(operands, dims)
    return emb_pad[:, :dims["EMB"]], logits_pad[:, :dims["NCL"]]


# ---------------------------------------------------------------------------
# Deterministic parameter init + driver
# ---------------------------------------------------------------------------
def init_params(key, in_ch, n_classes, embedding_size):
    k = jax.random.split(key, 6)
    return {
        # synthetic backbone conv: 3x3, in_ch -> n_classes feature width (HWIO)
        "conv_w": 0.1 * jax.random.normal(k[0], (3, 3, in_ch, n_classes),
                                          jnp.float32),
        "conv_b": 0.1 * jax.random.normal(k[1], (1, n_classes), jnp.float32),
        # embedding = nn.Linear(n_classes, embedding_size), stored transposed
        "emb_w": 0.1 * jax.random.normal(k[2], (n_classes, embedding_size),
                                         jnp.float32),
        "emb_b": 0.1 * jax.random.normal(k[3], (1, embedding_size),
                                         jnp.float32),
        # classifier = nn.Linear(embedding_size, n_classes), stored transposed
        "cls_w": 0.1 * jax.random.normal(k[4], (embedding_size, n_classes),
                                         jnp.float32),
        "cls_b": 0.1 * jax.random.normal(k[5], (1, n_classes), jnp.float32),
    }


if __name__ == "__main__":
    B, C, H, W = 2, 4, 16, 16
    N_CLASSES, EMB = 16, 64

    key = jax.random.PRNGKey(0)
    kx, kp = jax.random.split(key)
    x = jax.random.normal(kx, (B, C, H, W), jnp.float32)   # NCHW, like PyTorch
    params = init_params(kp, C, N_CLASSES, EMB)

    fwd = jax.jit(embedding_model_conv_forward)
    out = jax.block_until_ready(fwd(x, params))
    assert out.shape == (B, EMB) and out.dtype == jnp.float32

    eac = jax.jit(embed_and_classify)
    emb, logits = jax.block_until_ready(eac(x, params))
    assert emb.shape == (B, EMB) and logits.shape == (B, N_CLASSES)

    print("KERNEL_OK")
</pallas_src>

<mosaic_0001>
module attributes {stable_mosaic.version = 11 : i64} {
  func.func @fused_forward_kernel(%arg0: i32, %arg1: memref<256x128xbf16, #tpu.memory_space<vmem>>, %arg2: memref<128x128xbf16, #tpu.memory_space<vmem>>, %arg3: memref<1x128xf32, #tpu.memory_space<vmem>>, %arg4: memref<128x128xbf16, #tpu.memory_space<vmem>>, %arg5: memref<1x128xf32, #tpu.memory_space<vmem>>, %arg6: memref<128x128xbf16, #tpu.memory_space<vmem>>, %arg7: memref<1x128xf32, #tpu.memory_space<vmem>>, %arg8: memref<2x128xf32, #tpu.memory_space<vmem>>, %arg9: memref<2x128xf32, #tpu.memory_space<vmem>>, %arg10: memref<2x128xf32, #tpu.memory_space<vmem>>) attributes {dimension_semantics = [#tpu.dimension_semantics<arbitrary>], iteration_bounds = array<i64: 2>, scalar_prefetch = 0 : i64, scratch_operands = 1 : i64, tpu.core_type = #tpu.core_type<tc>, window_params = [{transform_indices = @transform_0, window_bounds = array<i64: 256, 128>}, {pipeline_mode = #tpu.pipeline_mode<synchronous>, transform_indices = @transform_1, window_bounds = array<i64: 128, 128>}, {pipeline_mode = #tpu.pipeline_mode<synchronous>, transform_indices = @transform_2, window_bounds = array<i64: 1, 128>}, {pipeline_mode = #tpu.pipeline_mode<synchronous>, transform_indices = @transform_3, window_bounds = array<i64: 128, 128>}, {pipeline_mode = #tpu.pipeline_mode<synchronous>, transform_indices = @transform_4, window_bounds = array<i64: 1, 128>}, {pipeline_mode = #tpu.pipeline_mode<synchronous>, transform_indices = @transform_5, window_bounds = array<i64: 128, 128>}, {pipeline_mode = #tpu.pipeline_mode<synchronous>, transform_indices = @transform_6, window_bounds = array<i64: 1, 128>}, {pipeline_mode = #tpu.pipeline_mode<synchronous>, transform_indices = @transform_7, window_bounds = array<i64: 2, 128>}, {pipeline_mode = #tpu.pipeline_mode<synchronous>, transform_indices = @transform_8, window_bounds = array<i64: 2, 128>}]} {
    %c0 = arith.constant 0 : index
    %c0_0 = arith.constant 0 : index
    %0 = vector.load %arg1[%c0, %c0_0] : memref<256x128xbf16, #tpu.memory_space<vmem>>, vector<256x128xbf16>
    %c0_1 = arith.constant 0 : index
    %c0_2 = arith.constant 0 : index
    %1 = vector.load %arg2[%c0_1, %c0_2] : memref<128x128xbf16, #tpu.memory_space<vmem>>, vector<128x128xbf16>
    %cst = arith.constant dense<0.000000e+00> : vector<256x128xf32>
    %2 = tpu.matmul %0, %1, %cst {dimension_numbers = #tpu.dot_dimension_numbers<[1], [0], [0], [1], [0, 0, 1, 1], [], []>} : vector<256x128xbf16>, vector<128x128xbf16>, vector<256x128xf32> -> vector<256x128xf32>
    %c0_3 = arith.constant 0 : index
    %c0_4 = arith.constant 0 : index
    %3 = vector.load %arg3[%c0_3, %c0_4] : memref<1x128xf32, #tpu.memory_space<vmem>>, vector<1x128xf32>
    %4 = vector.broadcast %3 : vector<1x128xf32> to vector<256x128xf32>
    %5 = arith.addf %2, %4 : vector<256x128xf32>
    %cst_5 = arith.constant 0.000000e+00 : f32
    %6 = vector.broadcast %cst_5 : f32 to vector<256x128xf32>
    %7 = arith.maximumf %5, %6 : vector<256x128xf32>
    %cst_6 = arith.constant dense<0.000000e+00> : vector<128xf32>
    %8 = vector.multi_reduction <add>, %7, %cst_6 [0] : vector<256x128xf32> to vector<128xf32>
    %9 = vector.shape_cast %8 : vector<128xf32> to vector<1x128xf32>
    %cst_7 = arith.constant 3.906250e-03 : f32
    %10 = vector.broadcast %cst_7 : f32 to vector<1x128xf32>
    %11 = arith.mulf %9, %10 : vector<1x128xf32>
    %12 = arith.index_cast %arg0 : i32 to index
    %c0_8 = arith.constant 0 : index
    %13 = vector.load %arg10[%12, %c0_8] : memref<2x128xf32, #tpu.memory_space<vmem>>, vector<1x128xf32>
    tpu.vector_store %arg10[%12, %c0_8], %11 {strides = array<i32>} : memref<2x128xf32, #tpu.memory_space<vmem>>, vector<1x128xf32>,
    %c1_i32 = arith.constant 1 : i32
    %14 = arith.cmpi eq, %arg0, %c1_i32 : i32
    %15 = arith.extui %14 : i1 to i32
    %c0_i32 = arith.constant 0 : i32
    %16 = arith.cmpi ne, %15, %c0_i32 : i32
    scf.if %16 {
      %c0_9 = arith.constant 0 : index
      %c0_10 = arith.constant 0 : index
      %17 = vector.load %arg10[%c0_9, %c0_10] : memref<2x128xf32, #tpu.memory_space<vmem>>, vector<2x128xf32>
      %18 = arith.truncf %17 : vector<2x128xf32> to vector<2x128xbf16>
      %c0_11 = arith.constant 0 : index
      %c0_12 = arith.constant 0 : index
      %19 = vector.load %arg4[%c0_11, %c0_12] : memref<128x128xbf16, #tpu.memory_space<vmem>>, vector<128x128xbf16>
      %cst_13 = arith.constant dense<0.000000e+00> : vector<2x128xf32>
      %20 = tpu.matmul %18, %19, %cst_13 {dimension_numbers = #tpu.dot_dimension_numbers<[1], [0], [0], [1], [0, 0, 1, 1], [], []>} : vector<2x128xbf16>, vector<128x128xbf16>, vector<2x128xf32> -> vector<2x128xf32>
      %c0_14 = arith.constant 0 : index
      %c0_15 = arith.constant 0 : index
      %21 = vector.load %arg5[%c0_14, %c0_15] : memref<1x128xf32, #tpu.memory_space<vmem>>, vector<1x128xf32>
      %22 = vector.broadcast %21 : vector<1x128xf32> to vector<2x128xf32>
      %23 = arith.addf %20, %22 : vector<2x128xf32>
      %c0_16 = arith.constant 0 : index
      %c0_17 = arith.constant 0 : index
      %24 = vector.load %arg8[%c0_16, %c0_17] : memref<2x128xf32, #tpu.memory_space<vmem>>, vector<2x128xf32>
      tpu.vector_store %arg8[%c0_16, %c0_17], %23 {strides = array<i32>} : memref<2x128xf32, #tpu.memory_space<vmem>>, vector<2x128xf32>,
      %25 = arith.truncf %23 : vector<2x128xf32> to vector<2x128xbf16>
      %c0_18 = arith.constant 0 : index
      %c0_19 = arith.constant 0 : index
      %26 = vector.load %arg6[%c0_18, %c0_19] : memref<128x128xbf16, #tpu.memory_space<vmem>>, vector<128x128xbf16>
      %cst_20 = arith.constant dense<0.000000e+00> : vector<2x128xf32>
      %27 = tpu.matmul %25, %26, %cst_20 {dimension_numbers = #tpu.dot_dimension_numbers<[1], [0], [0], [1], [0, 0, 1, 1], [], []>} : vector<2x128xbf16>, vector<128x128xbf16>, vector<2x128xf32> -> vector<2x128xf32>
      %c0_21 = arith.constant 0 : index
      %c0_22 = arith.constant 0 : index
      %28 = vector.load %arg7[%c0_21, %c0_22] : memref<1x128xf32, #tpu.memory_space<vmem>>, vector<1x128xf32>
      %29 = vector.broadcast %28 : vector<1x128xf32> to vector<2x128xf32>
      %30 = arith.addf %27, %29 : vector<2x128xf32>
      %c0_23 = arith.constant 0 : index
      %c0_24 = arith.constant 0 : index
      %31 = vector.load %arg9[%c0_23, %c0_24] : memref<2x128xf32, #tpu.memory_space<vmem>>, vector<2x128xf32>
      tpu.vector_store %arg9[%c0_23, %c0_24], %30 {strides = array<i32>} : memref<2x128xf32, #tpu.memory_space<vmem>>, vector<2x128xf32>,
    } else {
    }
    return
  }
  func.func @transform_0(%arg0: i32) -> (i32, i32) {
    %c0_i32 = arith.constant 0 : i32
    %c0_i32_0 = arith.constant 0 : i32
    return %arg0, %c0_i32 : i32, i32
  }
  func.func @transform_1(%arg0: i32) -> (i32, i32) {
    %c0_i32 = arith.constant 0 : i32
    %c0_i32_0 = arith.constant 0 : i32
    %c0_i32_1 = arith.constant 0 : i32
    return %c0_i32, %c0_i32_0 : i32, i32
  }
  func.func @transform_2(%arg0: i32) -> (i32, i32) {
    %c0_i32 = arith.constant 0 : i32
    %c0_i32_0 = arith.constant 0 : i32
    %c0_i32_1 = arith.constant 0 : i32
    return %c0_i32, %c0_i32_0 : i32, i32
  }
  func.func @transform_3(%arg0: i32) -> (i32, i32) {
    %c0_i32 = arith.constant 0 : i32
    %c0_i32_0 = arith.constant 0 : i32
    %c0_i32_1 = arith.constant 0 : i32
    return %c0_i32, %c0_i32_0 : i32, i32
  }
  func.func @transform_4(%arg0: i32) -> (i32, i32) {
    %c0_i32 = arith.constant 0 : i32
    %c0_i32_0 = arith.constant 0 : i32
    %c0_i32_1 = arith.constant 0 : i32
    return %c0_i32, %c0_i32_0 : i32, i32
  }
  func.func @transform_5(%arg0: i32) -> (i32, i32) {
    %c0_i32 = arith.constant 0 : i32
    %c0_i32_0 = arith.constant 0 : i32
    %c0_i32_1 = arith.constant 0 : i32
    return %c0_i32, %c0_i32_0 : i32, i32
  }
  func.func @transform_6(%arg0: i32) -> (i32, i32) {
    %c0_i32 = arith.constant 0 : i32
    %c0_i32_0 = arith.constant 0 : i32
    %c0_i32_1 = arith.constant 0 : i32
    return %c0_i32, %c0_i32_0 : i32, i32
  }
  func.func @transform_7(%arg0: i32) -> (i32, i32) {
    %c0_i32 = arith.constant 0 : i32
    %c0_i32_0 = arith.constant 0 : i32
    %c0_i32_1 = arith.constant 0 : i32
    return %c0_i32, %c0_i32_0 : i32, i32
  }
  func.func @transform_8(%arg0: i32) -> (i32, i32) {
    %c0_i32 = arith.constant 0 : i32
    %c0_i32_0 = arith.constant 0 : i32
    %c0_i32_1 = arith.constant 0 : i32
    return %c0_i32, %c0_i32_0 : i32, i32
  }
}

</mosaic_0001>

<llo_original>
// kernel: embedding_model_conv_forward.1
$region0: #{embedding_model_conv_forward.1}
  #allocation0 [shape = 'u32[]', space=smem, size = 0x4, offset = 0x4, fixed_abs, tag = 'smem constant byte address 0x4 - core index']
  #allocation1 [shape = 'u32[144,128]{1,0:T(1,128)}', space=vmem, size = 0x12000, scoped, tag = 'internal scratch']
  #allocation2 [shape = 'f32[2,128]{1,0:T(2,128)}', space=vmem, size = 0x400, scoped, tag = 'scratch operand']
  %s0 = inlined_call_operand.vmem [shape: bf16[512,128], index: 0, kind: input, shape index: {}]
  %s1 = inlined_call_operand.vmem [shape: bf16[128,128], index: 1, kind: input, shape index: {}]
  %s2 = inlined_call_operand.vmem [shape: f32[1,128], index: 2, kind: input, shape index: {}]
  %s3 = inlined_call_operand.vmem [shape: bf16[128,128], index: 3, kind: input, shape index: {}]
  %s4 = inlined_call_operand.vmem [shape: f32[1,128], index: 4, kind: input, shape index: {}]
  %s5 = inlined_call_operand.vmem [shape: bf16[128,128], index: 5, kind: input, shape index: {}]
  %s6 = inlined_call_operand.vmem [shape: f32[1,128], index: 6, kind: input, shape index: {}]
  %s7 = inlined_call_operand.hbm [shape: f32[2,128], index: 7, kind: output, shape index: {0}]
  %s8 = inlined_call_operand.hbm [shape: f32[2,128], index: 8, kind: output, shape index: {1}]
  %9 = xla_tuple %s7, %s8
  %s10 = sld [smem:[#allocation0]]
  $region73: #{embedding_model_conv_forward.1} parent=0
    _
  %s12 = ssub.s32 1, %s10
  %s13 = scalar_select 0, %s12, %s10
  $region1: #{embedding_model_conv_forward.1} parent=0
    #allocation3 [shape = 'u8[1024]{0}', space=vmem, size = 0x400, scoped, tag = 'output window, operand 0, single buffered']
    #allocation4 [shape = 's32[2]{0}', space=sflag, size = 0x8, scoped, tag = 'scoped memory for embedding_model_conv_forward.1']
    #allocation5 [shape = 'u8[1024]{0}', space=vmem, size = 0x400, scoped, tag = 'output window, operand 1, single buffered']
    #allocation6 [shape = 's32[1]{0}', space=sflag, size = 0x4, scoped, tag = 'scoped memory for embedding_model_conv_forward.1']
    %14 = vsyncpa [#allocation4], 0
    %15 = vsyncpa [#allocation6], 0
    loop: start=0, step=1, limit=4
    $region2: #{embedding_model_conv_forward.1} parent=1 // loop_pre_header
      _
    $region3: #{embedding_model_conv_forward.1} parent=1 // loop_header
      %s17 = sphi 0, %s21
      %p18 = scmp.ge.s32.totalorder %s17, 4
      %s27 = sphi 0, %s29
      %s30 = sphi 0, %s27
      %s31 = sphi 0, %s30
      %s47 = sphi 0, %s31
      %s51 = sphi 0, %s51
      %s53 = sphi 0, %s51
      %s54 = sphi 0, %s53
      %s68 = sphi 0, %s54
      %s72 = sphi 0, %s72
      %s74 = sphi 0, %s72
      %s75 = sphi 0, %s74
      %s89 = sphi 0, %s75
      %s93 = sphi 0, %s93
      %s95 = sphi 0, %s93
      %s96 = sphi 0, %s95
      %s110 = sphi 0, %s96
      %s114 = sphi 0, %s114
      %s116 = sphi 0, %s114
      %s117 = sphi 0, %s116
      %s131 = sphi 0, %s117
      %s135 = sphi 0, %s135
      %s137 = sphi 0, %s135
      %s138 = sphi 0, %s137
      %s152 = sphi 0, %s138
      %s156 = sphi 0, %s156
      %s158 = sphi 0, %s156
      %s159 = sphi 0, %s158
      %s173 = sphi 0, %s159
      %s177 = sphi 0, %s177
      %s179 = sphi 0, %s177
      %s180 = sphi 0, %s179
      %s194 = sphi 0, %s180
      %s198 = sphi 0, %s198
      %s200 = sphi 0, %s198
      %s201 = sphi 0, %s200
      %s215 = sphi 0, %s201
    $region4: #{embedding_model_conv_forward.1} parent=1 // loop_header_branch
      %20 = sbr.rel (%p18) target = $region8
    $region5: #{embedding_model_conv_forward.1} parent=1 // loop_body
      %s22 = ssub.s32 %s17, 1
      %s23 = ssub.s32 %s17, 2
      %s24 = sadd.s32 %s17, 1
      %s25 = ssub.s32 %s17, %s24
      %p26 = scmp.eq.s32.totalorder %s25, 0
      %s28 = sadd.s32 %s27, 1
      %s29 = scalar_select %p26, %s27, %s28
      %p32 = pneg %p26
      %p33 = scmp.eq.s32.totalorder %s17, 1
      %p34 = por %p32, %p33
      %p35 = scmp.ne.s32.totalorder %s27, %s30
      %p36 = scmp.eq.s32.totalorder %s17, 0
      %p37 = por %p35, %p36
      %p38 = scmp.ne.s32.totalorder %s27, %s30
      %p39 = scmp.eq.s32.totalorder %s22, 1
      %p40 = por %p38, %p39
      %p41 = scmp.ne.s32.totalorder %s30, %s31
      %p42 = scmp.eq.s32.totalorder %s22, 0
      %p43 = por %p41, %p42
      %p44 = scmp.ne.s32.totalorder %s30, %s31
      %p45 = scmp.eq.s32.totalorder %s23, 1
      %p46 = por %p44, %p45
      %p48 = scmp.ne.s32.totalorder %s31, %s47
      %p49 = scmp.eq.s32.totalorder %s23, 0
      %p50 = por %p48, %p49
      %s52 = sadd.s32 %s51, 1
      %p55 = scmp.eq.s32.totalorder %s17, 1
      %p56 = scmp.ne.s32.totalorder %s51, %s53
      %p57 = scmp.eq.s32.totalorder %s17, 0
      %p58 = por %p56, %p57
      %p59 = scmp.ne.s32.totalorder %s51, %s53
      %p60 = scmp.eq.s32.totalorder %s22, 1
      %p61 = por %p59, %p60
      %p62 = scmp.ne.s32.totalorder %s53, %s54
      %p63 = scmp.eq.s32.totalorder %s22, 0
      %p64 = por %p62, %p63
      %p65 = scmp.ne.s32.totalorder %s53, %s54
      %p66 = scmp.eq.s32.totalorder %s23, 1
      %p67 = por %p65, %p66
      %p69 = scmp.ne.s32.totalorder %s54, %s68
      %p70 = scmp.eq.s32.totalorder %s23, 0
      %p71 = por %p69, %p70
      %s73 = sadd.s32 %s72, 1
      %p76 = scmp.eq.s32.totalorder %s17, 1
      %p77 = scmp.ne.s32.totalorder %s72, %s74
      %p78 = scmp.eq.s32.totalorder %s17, 0
      %p79 = por %p77, %p78
      %p80 = scmp.ne.s32.totalorder %s72, %s74
      %p81 = scmp.eq.s32.totalorder %s22, 1
      %p82 = por %p80, %p81
      %p83 = scmp.ne.s32.totalorder %s74, %s75
      %p84 = scmp.eq.s32.totalorder %s22, 0
      %p85 = por %p83, %p84
      %p86 = scmp.ne.s32.totalorder %s74, %s75
      %p87 = scmp.eq.s32.totalorder %s23, 1
      %p88 = por %p86, %p87
      %p90 = scmp.ne.s32.totalorder %s75, %s89
      %p91 = scmp.eq.s32.totalorder %s23, 0
      %p92 = por %p90, %p91
      %s94 = sadd.s32 %s93, 1
      %p97 = scmp.eq.s32.totalorder %s17, 1
      %p98 = scmp.ne.s32.totalorder %s93, %s95
      %p99 = scmp.eq.s32.totalorder %s17, 0
      %p100 = por %p98, %p99
      %p101 = scmp.ne.s32.totalorder %s93, %s95
      %p102 = scmp.eq.s32.totalorder %s22, 1
      %p103 = por %p101, %p102
      %p104 = scmp.ne.s32.totalorder %s95, %s96
      %p105 = scmp.eq.s32.totalorder %s22, 0
      %p106 = por %p104, %p105
      %p107 = scmp.ne.s32.totalorder %s95, %s96
      %p108 = scmp.eq.s32.totalorder %s23, 1
      %p109 = por %p107, %p108
      %p111 = scmp.ne.s32.totalorder %s96, %s110
      %p112 = scmp.eq.s32.totalorder %s23, 0
      %p113 = por %p111, %p112
      %s115 = sadd.s32 %s114, 1
      %p118 = scmp.eq.s32.totalorder %s17, 1
      %p119 = scmp.ne.s32.totalorder %s114, %s116
      %p120 = scmp.eq.s32.totalorder %s17, 0
      %p121 = por %p119, %p120
      %p122 = scmp.ne.s32.totalorder %s114, %s116
      %p123 = scmp.eq.s32.totalorder %s22, 1
      %p124 = por %p122, %p123
      %p125 = scmp.ne.s32.totalorder %s116, %s117
      %p126 = scmp.eq.s32.totalorder %s22, 0
      %p127 = por %p125, %p126
      %p128 = scmp.ne.s32.totalorder %s116, %s117
      %p129 = scmp.eq.s32.totalorder %s23, 1
      %p130 = por %p128, %p129
      %p132 = scmp.ne.s32.totalorder %s117, %s131
      %p133 = scmp.eq.s32.totalorder %s23, 0
      %p134 = por %p132, %p133
      %s136 = sadd.s32 %s135, 1
      %p139 = scmp.eq.s32.totalorder %s17, 1
      %p140 = scmp.ne.s32.totalorder %s135, %s137
      %p141 = scmp.eq.s32.totalorder %s17, 0
      %p142 = por %p140, %p141
      %p143 = scmp.ne.s32.totalorder %s135, %s137
      %p144 = scmp.eq.s32.totalorder %s22, 1
      %p145 = por %p143, %p144
      %p146 = scmp.ne.s32.totalorder %s137, %s138
      %p147 = scmp.eq.s32.totalorder %s22, 0
      %p148 = por %p146, %p147
      %p149 = scmp.ne.s32.totalorder %s137, %s138
      %p150 = scmp.eq.s32.totalorder %s23, 1
      %p151 = por %p149, %p150
      %p153 = scmp.ne.s32.totalorder %s138, %s152
      %p154 = scmp.eq.s32.totalorder %s23, 0
      %p155 = por %p153, %p154
      %s157 = sadd.s32 %s156, 1
      %p160 = scmp.eq.s32.totalorder %s17, 1
      %p161 = scmp.ne.s32.totalorder %s156, %s158
      %p162 = scmp.eq.s32.totalorder %s17, 0
      %p163 = por %p161, %p162
      %p164 = scmp.ne.s32.totalorder %s156, %s158
      %p165 = scmp.eq.s32.totalorder %s22, 1
      %p166 = por %p164, %p165
      %p167 = scmp.ne.s32.totalorder %s158, %s159
      %p168 = scmp.eq.s32.totalorder %s22, 0
      %p169 = por %p167, %p168
      %p170 = scmp.ne.s32.totalorder %s158, %s159
      %p171 = scmp.eq.s32.totalorder %s23, 1
      %p172 = por %p170, %p171
      %p174 = scmp.ne.s32.totalorder %s159, %s173
      %p175 = scmp.eq.s32.totalorder %s23, 0
      %p176 = por %p174, %p175
      %s178 = sadd.s32 %s177, 1
      %p181 = scmp.eq.s32.totalorder %s17, 1
      %p182 = scmp.ne.s32.totalorder %s177, %s179
      %p183 = scmp.eq.s32.totalorder %s17, 0
      %p184 = por %p182, %p183
      %p185 = scmp.ne.s32.totalorder %s177, %s179
      %p186 = scmp.eq.s32.totalorder %s22, 1
      %p187 = por %p185, %p186
      %p188 = scmp.ne.s32.totalorder %s179, %s180
      %p189 = scmp.eq.s32.totalorder %s22, 0
      %p190 = por %p188, %p189
      %p191 = scmp.ne.s32.totalorder %s179, %s180
      %p192 = scmp.eq.s32.totalorder %s23, 1
      %p193 = por %p191, %p192
      %p195 = scmp.ne.s32.totalorder %s180, %s194
      %p196 = scmp.eq.s32.totalorder %s23, 0
      %p197 = por %p195, %p196
      %s199 = sadd.s32 %s198, 1
      %p202 = scmp.eq.s32.totalorder %s17, 1
      %p203 = scmp.ne.s32.totalorder %s198, %s200
      %p204 = scmp.eq.s32.totalorder %s17, 0
      %p205 = por %p203, %p204
      %p206 = scmp.ne.s32.totalorder %s198, %s200
      %p207 = scmp.eq.s32.totalorder %s22, 1
      %p208 = por %p206, %p207
      %p209 = scmp.ne.s32.totalorder %s200, %s201
      %p210 = scmp.eq.s32.totalorder %s22, 0
      %p211 = por %p209, %p210
      %p212 = scmp.ne.s32.totalorder %s200, %s201
      %p213 = scmp.eq.s32.totalorder %s23, 1
      %p214 = por %p212, %p213
      %p216 = scmp.ne.s32.totalorder %s201, %s215
      %p217 = scmp.eq.s32.totalorder %s23, 0
      %p218 = por %p216, %p217
      %p219 = scmp.le.s32.totalorder 1, %s17
      %p220 = scmp.lt.s32.totalorder %s17, 3
      %p221 = pnand %p219, %p220
      %p222 = pneg %p221
      // Predicated region
      $region9: #{embedding_model_conv_forward.1} parent=5 // pred_check
        _
      $region10: #{embedding_model_conv_forward.1} parent=5 // pred_check_branch
        %224 = sbr.rel (%p221) target = $region12
      $region11: #{embedding_model_conv_forward.1} parent=5 // pred_region
        %s225 = ssub.s32 %s17, 1
        // Predicated region
        $region13: #{embedding_model_conv_forward.1} parent=11 // pred_check
          %p226 = pneg %p64
        $region14: #{embedding_model_conv_forward.1} parent=11 // pred_check_branch
          %228 = sbr.rel (%p226) target = $region16
        $region15: #{embedding_model_conv_forward.1} parent=11 // pred_region
          _
        $region16: #{embedding_model_conv_forward.1} parent=11 // pred_fallthru
          _
        // Predicated region
        $region17: #{embedding_model_conv_forward.1} parent=11 // pred_check
          %p229 = pneg %p85
        $region18: #{embedding_model_conv_forward.1} parent=11 // pred_check_branch
          %231 = sbr.rel (%p229) target = $region20
        $region19: #{embedding_model_conv_forward.1} parent=11 // pred_region
          _
        $region20: #{embedding_model_conv_forward.1} parent=11 // pred_fallthru
          _
        // Predicated region
        $region21: #{embedding_model_conv_forward.1} parent=11 // pred_check
          %p232 = pneg %p106
        $region22: #{embedding_model_conv_forward.1} parent=11 // pred_check_branch
          %234 = sbr.rel (%p232) target = $region24
        $region23: #{embedding_model_conv_forward.1} parent=11 // pred_region
          _
        $region24: #{embedding_model_conv_forward.1} parent=11 // pred_fallthru
          _
        // Predicated region
        $region25: #{embedding_model_conv_forward.1} parent=11 // pred_check
          %p235 = pneg %p127
        $region26: #{embedding_model_conv_forward.1} parent=11 // pred_check_branch
          %237 = sbr.rel (%p235) target = $region28
        $region27: #{embedding_model_conv_forward.1} parent=11 // pred_region
          _
        $region28: #{embedding_model_conv_forward.1} parent=11 // pred_fallthru
          _
        // Predicated region
        $region29: #{embedding_model_conv_forward.1} parent=11 // pred_check
          %p238 = pneg %p148
        $region30: #{embedding_model_conv_forward.1} parent=11 // pred_check_branch
          %240 = sbr.rel (%p238) target = $region32
        $region31: #{embedding_model_conv_forward.1} parent=11 // pred_region
          _
        $region32: #{embedding_model_conv_forward.1} parent=11 // pred_fallthru
          _
        // Predicated region
        $region33: #{embedding_model_conv_forward.1} parent=11 // pred_check
          %p241 = pneg %p169
        $region34: #{embedding_model_conv_forward.1} parent=11 // pred_check_branch
          %243 = sbr.rel (%p241) target = $region36
        $region35: #{embedding_model_conv_forward.1} parent=11 // pred_region
          _
        $region36: #{embedding_model_conv_forward.1} parent=11 // pred_fallthru
          _
      $region12: #{embedding_model_conv_forward.1} parent=5 // pred_fallthru
        _
      %p244 = scmp.lt.s32.totalorder %s17, 2
      // Predicated region
      $region37: #{embedding_model_conv_forward.1} parent=5 // pred_check
        %p245 = pneg %p244
      $region38: #{embedding_model_conv_forward.1} parent=5 // pred_check_branch
        %247 = sbr.rel (%p245) target = $region40
      $region39: #{embedding_model_conv_forward.1} parent=5 // pred_region
        // Predicated region
        $region41: #{embedding_model_conv_forward.1} parent=39 // pred_check
          %p248 = pneg %p37
        $region42: #{embedding_model_conv_forward.1} parent=39 // pred_check_branch
          %250 = sbr.rel (%p248) target = $region44
        $region43: #{embedding_model_conv_forward.1} parent=39 // pred_region
          %s251 = smul.u32 32, %s17
          %p252 = scmp.lt.s32.totalorder %s251, 63
          %s253 = scalar_select %p252, %s251, 63
          %s254 = smul.addr %s253, 4
          %s255 = scalar_lea.vmem %s0, %s254
          %s256 = smul.u32 32, %s17
        $region44: #{embedding_model_conv_forward.1} parent=39 // pred_fallthru
          _
      $region40: #{embedding_model_conv_forward.1} parent=5 // pred_fallthru
        _
      %p257 = scmp.le.s32.totalorder 1, %s17
      %p258 = scmp.lt.s32.totalorder %s17, 3
      %p259 = pnand %p257, %p258
      %p260 = pneg %p259
      // Predicated region
      $region45: #{embedding_model_conv_forward.1} parent=5 // pred_check
        _
      $region46: #{embedding_model_conv_forward.1} parent=5 // pred_check_branch
        %262 = sbr.rel (%p259) target = $region48
      $region47: #{embedding_model_conv_forward.1} parent=5 // pred_region
        %s263 = ssub.s32 %s17, 1
        %s264 = smul.u32 32, %s22
        %p265 = scmp.lt.s32.totalorder %s264, 63
        %s266 = scalar_select %p265, %s264, 63
        %s267 = smul.addr %s266, 4
        %s268 = scalar_lea.vmem %s0, %s267
        %p269 = pneg %p43
        %p270 = pneg %p40
        %p271 = pneg %p64
        %p272 = pneg %p61
        %p273 = pneg %p85
        %p274 = pneg %p82
        %p275 = pneg %p106
        %p276 = pneg %p103
        %p277 = pneg %p127
        %p278 = pneg %p124
        %p279 = pneg %p148
        %p280 = pneg %p145
        %p281 = pneg %p169
        %p282 = pneg %p166
        %p283 = pneg %p190
        %p284 = pneg %p187
        %p285 = pneg %p211
        %p286 = pneg %p208
        %s287 = smul.u32 32, %s22
        %p288 = scmp.lt.s32.totalorder %s287, 63
        %s289 = scalar_select %p288, %s287, 63
        %s290 = smul.addr %s289, 4
        %s291 = scalar_lea.vmem %s0, %s290
        %s292 = smul.u32 32, %s22
        %v294 = vld [vmem:[%s291] sm:$0xf]
        %v295 = vld [vmem:[%s291 + $0x4] sm:$0xf]
        %v296 = vld [vmem:[%s291 + $0x8] sm:$0xf]
        %v297 = vld [vmem:[%s291 + $0xc] sm:$0xf]
        %v298 = vld [vmem:[%s291 + $0x10] sm:$0xf]
        %v299 = vld [vmem:[%s291 + $0x14] sm:$0xf]
        %v300 = vld [vmem:[%s291 + $0x18] sm:$0xf]
        %v301 = vld [vmem:[%s291 + $0x1c] sm:$0xf]
        %v302 = vld [vmem:[%s291 + $0x20] sm:$0xf]
        %v303 = vld [vmem:[%s291 + $0x24] sm:$0xf]
        %v304 = vld [vmem:[%s291 + $0x28] sm:$0xf]
        %v305 = vld [vmem:[%s291 + $0x2c] sm:$0xf]
        %v306 = vld [vmem:[%s291 + $0x30] sm:$0xf]
        %v307 = vld [vmem:[%s291 + $0x34] sm:$0xf]
        %v308 = vld [vmem:[%s291 + $0x38] sm:$0xf]
        %v309 = vld [vmem:[%s291 + $0x3c] sm:$0xf]
        %v310 = vld [vmem:[%s291 + $0x40] sm:$0xf]
        %v311 = vld [vmem:[%s291 + $0x44] sm:$0xf]
        %v312 = vld [vmem:[%s291 + $0x48] sm:$0xf]
        %v313 = vld [vmem:[%s291 + $0x4c] sm:$0xf]
        %v314 = vld [vmem:[%s291 + $0x50] sm:$0xf]
        %v315 = vld [vmem:[%s291 + $0x54] sm:$0xf]
        %v316 = vld [vmem:[%s291 + $0x58] sm:$0xf]
        %v317 = vld [vmem:[%s291 + $0x5c] sm:$0xf]
        %v318 = vld [vmem:[%s291 + $0x60] sm:$0xf]
        %v319 = vld [vmem:[%s291 + $0x64] sm:$0xf]
        %v320 = vld [vmem:[%s291 + $0x68] sm:$0xf]
        %v321 = vld [vmem:[%s291 + $0x6c] sm:$0xf]
        %v322 = vld [vmem:[%s291 + $0x70] sm:$0xf]
        %v323 = vld [vmem:[%s291 + $0x74] sm:$0xf]
        %v324 = vld [vmem:[%s291 + $0x78] sm:$0xf]
        %v325 = vld [vmem:[%s291 + $0x7c] sm:$0xf]
        %v326 = vld [vmem:[%s1] sm:$0xf]
        %v327 = vld [vmem:[%s1 + $0x4] sm:$0xf]
        %v328 = vld [vmem:[%s1 + $0x8] sm:$0xf]
        %v329 = vld [vmem:[%s1 + $0xc] sm:$0xf]
        %v330 = vld [vmem:[%s1 + $0x10] sm:$0xf]
        %v331 = vld [vmem:[%s1 + $0x14] sm:$0xf]
        %v332 = vld [vmem:[%s1 + $0x18] sm:$0xf]
        %v333 = vld [vmem:[%s1 + $0x1c] sm:$0xf]
        %v334 = vld [vmem:[%s1 + $0x20] sm:$0xf]
        %v335 = vld [vmem:[%s1 + $0x24] sm:$0xf]
        %v336 = vld [vmem:[%s1 + $0x28] sm:$0xf]
        %v337 = vld [vmem:[%s1 + $0x2c] sm:$0xf]
        %v338 = vld [vmem:[%s1 + $0x30] sm:$0xf]
        %v339 = vld [vmem:[%s1 + $0x34] sm:$0xf]
        %v340 = vld [vmem:[%s1 + $0x38] sm:$0xf]
        %v341 = vld [vmem:[%s1 + $0x3c] sm:$0xf]
        %v342 = vld [vmem:[%s2] sm:$0x1]
        %v344 = vlaneseq
        %v345 = vshrl.u32 %v344, 7
        %v346 = vsub.s32 0, %v345
        %v347 = vrot.slane %v342, %v346
        %v381 = vunpack.c.l.b16 %v294
        %v382 = vunpack.c.l.b16 %v295
        %v383 = vunpack.c.l.b16 %v296
        %v384 = vunpack.c.l.b16 %v297
        %v385 = vunpack.c.l.b16 %v298
        %v386 = vunpack.c.l.b16 %v299
        %v387 = vunpack.c.l.b16 %v300
        %v388 = vunpack.c.l.b16 %v301
        %v389 = vunpack.c.l.b16 %v302
        %v390 = vunpack.c.l.b16 %v303
        %v391 = vunpack.c.l.b16 %v304
        %v392 = vunpack.c.l.b16 %v305
        %v393 = vunpack.c.l.b16 %v306
        %v394 = vunpack.c.l.b16 %v307
        %v395 = vunpack.c.l.b16 %v308
        %v396 = vunpack.c.l.b16 %v309
        %v397 = vunpack.c.l.b16 %v310
        %v398 = vunpack.c.l.b16 %v311
        %v399 = vunpack.c.l.b16 %v312
        %v400 = vunpack.c.l.b16 %v313
        %v401 = vunpack.c.l.b16 %v314
        %v402 = vunpack.c.l.b16 %v315
        %v403 = vunpack.c.l.b16 %v316
        %v404 = vunpack.c.l.b16 %v317
        %v405 = vunpack.c.l.b16 %v318
        %v406 = vunpack.c.l.b16 %v319
        %v407 = vunpack.c.l.b16 %v320
        %v408 = vunpack.c.l.b16 %v321
        %v409 = vunpack.c.l.b16 %v322
        %v410 = vunpack.c.l.b16 %v323
        %v411 = vunpack.c.l.b16 %v324
        %v412 = vunpack.c.l.b16 %v325
        %v413 = vpack.c.b16 %v382, %v381
        %v414 = vpack.c.b16 %v384, %v383
        %v415 = vpack.c.b16 %v386, %v385
        %v416 = vpack.c.b16 %v388, %v387
        %v417 = vpack.c.b16 %v390, %v389
        %v418 = vpack.c.b16 %v392, %v391
        %v419 = vpack.c.b16 %v394, %v393
        %v420 = vpack.c.b16 %v396, %v395
        %v421 = vpack.c.b16 %v398, %v397
        %v422 = vpack.c.b16 %v400, %v399
        %v423 = vpack.c.b16 %v402, %v401
        %v424 = vpack.c.b16 %v404, %v403
        %v425 = vpack.c.b16 %v406, %v405
        %v426 = vpack.c.b16 %v408, %v407
        %v427 = vpack.c.b16 %v410, %v409
        %v428 = vpack.c.b16 %v412, %v411
        %v461 = vunpack.c.l.b16 %v326
        %v462 = vunpack.c.l.b16 %v327
        %v463 = vunpack.c.l.b16 %v328
        %v464 = vunpack.c.l.b16 %v329
        %v465 = vunpack.c.l.b16 %v330
        %v466 = vunpack.c.l.b16 %v331
        %v467 = vunpack.c.l.b16 %v332
        %v468 = vunpack.c.l.b16 %v333
        %v469 = vunpack.c.l.b16 %v334
        %v470 = vunpack.c.l.b16 %v335
        %v471 = vunpack.c.l.b16 %v336
        %v472 = vunpack.c.l.b16 %v337
        %v473 = vunpack.c.l.b16 %v338
        %v474 = vunpack.c.l.b16 %v339
        %v475 = vunpack.c.l.b16 %v340
        %v476 = vunpack.c.l.b16 %v341
        %v477 = vpack.c.b16 %v462, %v461
        %v478 = vpack.c.b16 %v464, %v463
        %v479 = vpack.c.b16 %v466, %v465
        %v480 = vpack.c.b16 %v468, %v467
        %v481 = vpack.c.b16 %v470, %v469
        %v482 = vpack.c.b16 %v472, %v471
        %v483 = vpack.c.b16 %v474, %v473
        %v484 = vpack.c.b16 %v476, %v475
        %493 = vmatprep.subr.bf16.mxu0 0
        %494 = vmatpush1.bf16.msra.mxu0 %v477
        %495 = vmatprep.subr.bf16.mxu0 0
        %496 = vmatpush1.bf16.msra.mxu0 %v478
        %497 = vmatprep.subr.bf16.mxu0 0
        %498 = vmatpush1.bf16.msra.mxu0 %v479
        %499 = vmatprep.subr.bf16.mxu0 0
        %500 = vmatpush1.bf16.msra.mxu0 %v480
        %501 = vmatprep.subr.bf16.mxu0 0
        %502 = vmatpush1.bf16.msra.mxu0 %v481
        %503 = vmatprep.subr.bf16.mxu0 0
        %504 = vmatpush1.bf16.msra.mxu0 %v482
        %505 = vmatprep.subr.bf16.mxu0 0
        %506 = vmatpush1.bf16.msra.mxu0 %v483
        %507 = vmatprep.subr.bf16.mxu0 0
        %508 = vmatpush1.bf16.msra.mxu0 %v484
        %509 = vmatprep.subr.bf16.mxu0 0
        %510 = vmatpush1.bf16.msra.mxu0 0
        %511 = vmatprep.subr.bf16.mxu0 0
        %512 = vmatpush1.bf16.msra.mxu0 0
        %513 = vmatprep.subr.bf16.mxu0 0
        %514 = vmatpush1.bf16.msra.mxu0 0
        %515 = vmatprep.subr.bf16.mxu0 0
        %516 = vmatpush1.bf16.msra.mxu0 0
        %517 = vmatprep.subr.bf16.mxu0 0
        %518 = vmatpush1.bf16.msra.mxu0 0
        %519 = vmatprep.subr.bf16.mxu0 0
        %520 = vmatpush1.bf16.msra.mxu0 0
        %521 = vmatprep.subr.bf16.mxu0 0
        %522 = vmatpush1.bf16.msra.mxu0 0
        %523 = vmatprep.subr.bf16.mxu0 0
        %524 = vmatpush1.bf16.msra.mxu0 0
        %525 = vmatprep.mubr.bf16.mxu0 0
        %526 = vmatmul.mubr.bf16.gmra.mrb[0].mxu0 %v413
        %v527 = vpop.f32.mrb[0].mxu0
        %v528 = vadd.f32 %v347, %v527
        %v529 = vpop.f32.mrb[0].mxu0
        %v530 = vpop.f32.mrb[0].mxu0
        %v531 = vadd.f32 %v347, %v530
        %v532 = vpop.f32.mrb[0].mxu0
        %533 = vmatprep.mubr.bf16.mxu0 0
        %534 = vmatmul.mubr.bf16.gmra.mrb[0].mxu0 %v414
        %v535 = vpop.f32.mrb[0].mxu0
        %v536 = vadd.f32 %v347, %v535
        %v537 = vpop.f32.mrb[0].mxu0
        %v538 = vpop.f32.mrb[0].mxu0
        %v539 = vadd.f32 %v347, %v538
        %v540 = vpop.f32.mrb[0].mxu0
        %541 = vmatprep.mubr.bf16.mxu0 0
        %542 = vmatmul.mubr.bf16.gmra.mrb[0].mxu0 %v415
        %v543 = vpop.f32.mrb[0].mxu0
        %v544 = vadd.f32 %v347, %v543
        %v545 = vpop.f32.mrb[0].mxu0
        %v546 = vpop.f32.mrb[0].mxu0
        %v547 = vadd.f32 %v347, %v546
        %v548 = vpop.f32.mrb[0].mxu0
        %549 = vmatprep.mubr.bf16.mxu0 0
        %550 = vmatmul.mubr.bf16.gmra.mrb[0].mxu0 %v416
        %v551 = vpop.f32.mrb[0].mxu0
        %v552 = vadd.f32 %v347, %v551
        %v553 = vpop.f32.mrb[0].mxu0
        %v554 = vpop.f32.mrb[0].mxu0
        %v555 = vadd.f32 %v347, %v554
        %v556 = vpop.f32.mrb[0].mxu0
        %557 = vmatprep.mubr.bf16.mxu0 0
        %558 = vmatmul.mubr.bf16.gmra.mrb[0].mxu0 %v417
        %v559 = vpop.f32.mrb[0].mxu0
        %v560 = vadd.f32 %v347, %v559
        %v561 = vpop.f32.mrb[0].mxu0
        %v562 = vpop.f32.mrb[0].mxu0
        %v563 = vadd.f32 %v347, %v562
        %v564 = vpop.f32.mrb[0].mxu0
        %565 = vmatprep.mubr.bf16.mxu0 0
        %566 = vmatmul.mubr.bf16.gmra.mrb[0].mxu0 %v418
        %v567 = vpop.f32.mrb[0].mxu0
        %v568 = vadd.f32 %v347, %v567
        %v569 = vpop.f32.mrb[0].mxu0
        %v570 = vpop.f32.mrb[0].mxu0
        %v571 = vadd.f32 %v347, %v570
        %v572 = vpop.f32.mrb[0].mxu0
        %573 = vmatprep.mubr.bf16.mxu0 0
        %574 = vmatmul.mubr.bf16.gmra.mrb[0].mxu0 %v419
        %v575 = vpop.f32.mrb[0].mxu0
        %v576 = vadd.f32 %v347, %v575
        %v577 = vpop.f32.mrb[0].mxu0
        %v578 = vpop.f32.mrb[0].mxu0
        %v579 = vadd.f32 %v347, %v578
        %v580 = vpop.f32.mrb[0].mxu0
        %581 = vmatprep.mubr.bf16.mxu0 0
        %582 = vmatmul.mubr.bf16.gmra.mrb[0].mxu0 %v420
        %v583 = vpop.f32.mrb[0].mxu0
        %v584 = vadd.f32 %v347, %v583
        %v585 = vpop.f32.mrb[0].mxu0
        %v586 = vpop.f32.mrb[0].mxu0
        %v587 = vadd.f32 %v347, %v586
        %v588 = vpop.f32.mrb[0].mxu0
        %589 = vmatprep.mubr.bf16.mxu0 0
        %590 = vmatmul.mubr.bf16.gmra.mrb[0].mxu0 %v421
        %v591 = vpop.f32.mrb[0].mxu0
        %v592 = vadd.f32 %v347, %v591
        %v593 = vpop.f32.mrb[0].mxu0
        %v594 = vpop.f32.mrb[0].mxu0
        %v595 = vadd.f32 %v347, %v594
        %v596 = vpop.f32.mrb[0].mxu0
        %597 = vmatprep.mubr.bf16.mxu0 0
        %598 = vmatmul.mubr.bf16.gmra.mrb[0].mxu0 %v422
        %v599 = vpop.f32.mrb[0].mxu0
        %v600 = vadd.f32 %v347, %v599
        %v601 = vpop.f32.mrb[0].mxu0
        %v602 = vpop.f32.mrb[0].mxu0
        %v603 = vadd.f32 %v347, %v602
        %v604 = vpop.f32.mrb[0].mxu0
        %605 = vmatprep.mubr.bf16.mxu0 0
        %606 = vmatmul.mubr.bf16.gmra.mrb[0].mxu0 %v423
        %v607 = vpop.f32.mrb[0].mxu0
        %v608 = vadd.f32 %v347, %v607
        %v609 = vpop.f32.mrb[0].mxu0
        %v610 = vpop.f32.mrb[0].mxu0
        %v611 = vadd.f32 %v347, %v610
        %v612 = vpop.f32.mrb[0].mxu0
        %613 = vmatprep.mubr.bf16.mxu0 0
        %614 = vmatmul.mubr.bf16.gmra.mrb[0].mxu0 %v424
        %v615 = vpop.f32.mrb[0].mxu0
        %v616 = vadd.f32 %v347, %v615
        %v617 = vpop.f32.mrb[0].mxu0
        %v618 = vpop.f32.mrb[0].mxu0
        %v619 = vadd.f32 %v347, %v618
        %v620 = vpop.f32.mrb[0].mxu0
        %621 = vmatprep.mubr.bf16.mxu0 0
        %622 = vmatmul.mubr.bf16.gmra.mrb[0].mxu0 %v425
        %v623 = vpop.f32.mrb[0].mxu0
        %v624 = vadd.f32 %v347, %v623
        %v625 = vpop.f32.mrb[0].mxu0
        %v626 = vpop.f32.mrb[0].mxu0
        %v627 = vadd.f32 %v347, %v626
        %v628 = vpop.f32.mrb[0].mxu0
        %629 = vmatprep.mubr.bf16.mxu0 0
        %630 = vmatmul.mubr.bf16.gmra.mrb[0].mxu0 %v426
        %v631 = vpop.f32.mrb[0].mxu0
        %v632 = vadd.f32 %v347, %v631
        %v633 = vpop.f32.mrb[0].mxu0
        %v634 = vpop.f32.mrb[0].mxu0
        %v635 = vadd.f32 %v347, %v634
        %v636 = vpop.f32.mrb[0].mxu0
        %637 = vmatprep.mubr.bf16.mxu0 0
        %638 = vmatmul.mubr.bf16.gmra.mrb[0].mxu0 %v427
        %v639 = vpop.f32.mrb[0].mxu0
        %v640 = vadd.f32 %v347, %v639
        %v641 = vpop.f32.mrb[0].mxu0
        %v642 = vpop.f32.mrb[0].mxu0
        %v643 = vadd.f32 %v347, %v642
        %v644 = vpop.f32.mrb[0].mxu0
        %645 = vmatprep.mubr.bf16.mxu0 0
        %646 = vmatmul.mubr.bf16.gmra.mrb[0].mxu0 %v428
        %v647 = vpop.f32.mrb[0].mxu0
        %v648 = vadd.f32 %v347, %v647
        %v649 = vpop.f32.mrb[0].mxu0
        %v650 = vpop.f32.mrb[0].mxu0
        %v651 = vadd.f32 %v347, %v650
        %v652 = vpop.f32.mrb[0].mxu0
        %653 = vdwg.mxu0
        %v654 = vmax.f32 %v528, 0.0
        %v655 = vmax.f32 %v531, 0.0
        %v656 = vmax.f32 %v536, 0.0
        %v657 = vmax.f32 %v539, 0.0
        %v658 = vmax.f32 %v544, 0.0
        %v659 = vmax.f32 %v547, 0.0
        %v660 = vmax.f32 %v552, 0.0
        %v661 = vmax.f32 %v555, 0.0
        %v662 = vmax.f32 %v560, 0.0
        %v663 = vmax.f32 %v563, 0.0
        %v664 = vmax.f32 %v568, 0.0
        %v665 = vmax.f32 %v571, 0.0
        %v666 = vmax.f32 %v576, 0.0
        %v667 = vmax.f32 %v579, 0.0
        %v668 = vmax.f32 %v584, 0.0
        %v669 = vmax.f32 %v587, 0.0
        %v670 = vmax.f32 %v592, 0.0
        %v671 = vmax.f32 %v595, 0.0
        %v672 = vmax.f32 %v600, 0.0
        %v673 = vmax.f32 %v603, 0.0
        %v674 = vmax.f32 %v608, 0.0
        %v675 = vmax.f32 %v611, 0.0
        %v676 = vmax.f32 %v616, 0.0
        %v677 = vmax.f32 %v619, 0.0
        %v678 = vmax.f32 %v624, 0.0
        %v679 = vmax.f32 %v627, 0.0
        %v680 = vmax.f32 %v632, 0.0
        %v681 = vmax.f32 %v635, 0.0
        %v682 = vmax.f32 %v640, 0.0
        %v683 = vmax.f32 %v643, 0.0
        %v684 = vmax.f32 %v648, 0.0
        %v685 = vmax.f32 %v651, 0.0
        %v686 = vadd.f32 %v654, %v655
        %v687 = vadd.f32 %v686, %v656
        %v688 = vadd.f32 %v687, %v657
        %v689 = vadd.f32 %v688, %v658
        %v690 = vadd.f32 %v689, %v659
        %v691 = vadd.f32 %v690, %v660
        %v692 = vadd.f32 %v691, %v661
        %v693 = vadd.f32 %v692, %v662
        %v694 = vadd.f32 %v693, %v663
        %v695 = vadd.f32 %v694, %v664
        %v696 = vadd.f32 %v695, %v665
        %v697 = vadd.f32 %v696, %v666
        %v698 = vadd.f32 %v697, %v667
        %v699 = vadd.f32 %v698, %v668
        %v700 = vadd.f32 %v699, %v669
        %v701 = vadd.f32 %v700, %v670
        %v702 = vadd.f32 %v701, %v671
        %v703 = vadd.f32 %v702, %v672
        %v704 = vadd.f32 %v703, %v673
        %v705 = vadd.f32 %v704, %v674
        %v706 = vadd.f32 %v705, %v675
        %v707 = vadd.f32 %v706, %v676
        %v708 = vadd.f32 %v707, %v677
        %v709 = vadd.f32 %v708, %v678
        %v710 = vadd.f32 %v709, %v679
        %v711 = vadd.f32 %v710, %v680
        %v712 = vadd.f32 %v711, %v681
        %v713 = vadd.f32 %v712, %v682
        %v714 = vadd.f32 %v713, %v683
        %v715 = vadd.f32 %v714, %v684
        %v716 = vadd.f32 %v715, %v685
        %v717 = vrot.slane %v716, 4
        %v718 = vadd.f32 %v716, %v717
        %v719 = vrot.slane %v718, 2
        %v720 = vadd.f32 %v718, %v719
        %v721 = vrot.slane %v720, 1
        %v722 = vadd.f32 %v720, %v721
        %v723 = vmul.f32 %v722, 0.00390625
        %s724 = scalar_lea.vmem [#allocation2], %s22
        %725 = vst [vmem:[%s724] sm:$0x1] %v723
        %p726 = scmp.eq.s32.totalorder %s22, 1
        // Predicated region
        $region49: #{embedding_model_conv_forward.1} parent=47 // pred_check
          %p727 = pneg %p726
        $region50: #{embedding_model_conv_forward.1} parent=47 // pred_check_branch
          %729 = sbr.rel (%p727) target = $region52
        $region51: #{embedding_model_conv_forward.1} parent=47 // pred_region
          %v730 = vld [vmem:[#allocation2] sm:$0x3]
          %v731 = vpack.c.bf16 %v730, %v730
          %v732 = vld [vmem:[%s3] sm:$0xf]
          %v733 = vld [vmem:[%s3 + $0x4] sm:$0xf]
          %v734 = vld [vmem:[%s3 + $0x8] sm:$0xf]
          %v735 = vld [vmem:[%s3 + $0xc] sm:$0xf]
          %v736 = vld [vmem:[%s3 + $0x10] sm:$0xf]
          %v737 = vld [vmem:[%s3 + $0x14] sm:$0xf]
          %v738 = vld [vmem:[%s3 + $0x18] sm:$0xf]
          %v739 = vld [vmem:[%s3 + $0x1c] sm:$0xf]
          %v740 = vld [vmem:[%s3 + $0x20] sm:$0xf]
          %v741 = vld [vmem:[%s3 + $0x24] sm:$0xf]
          %v742 = vld [vmem:[%s3 + $0x28] sm:$0xf]
          %v743 = vld [vmem:[%s3 + $0x2c] sm:$0xf]
          %v744 = vld [vmem:[%s3 + $0x30] sm:$0xf]
          %v745 = vld [vmem:[%s3 + $0x34] sm:$0xf]
          %v746 = vld [vmem:[%s3 + $0x38] sm:$0xf]
          %v747 = vld [vmem:[%s3 + $0x3c] sm:$0xf]
          %v748 = vld [vmem:[%s4] sm:$0x1]
          %v750 = vlaneseq
          %v751 = vshrl.u32 %v750, 7
          %v752 = vsub.s32 0, %v751
          %v753 = vrot.slane %v748, %v752
          %v771 = vunpack.c.l.b16 %v732
          %v772 = vunpack.c.l.b16 %v733
          %v773 = vunpack.c.l.b16 %v734
          %v774 = vunpack.c.l.b16 %v735
          %v775 = vunpack.c.l.b16 %v736
          %v776 = vunpack.c.l.b16 %v737
          %v777 = vunpack.c.l.b16 %v738
          %v778 = vunpack.c.l.b16 %v739
          %v779 = vunpack.c.l.b16 %v740
          %v780 = vunpack.c.l.b16 %v741
          %v781 = vunpack.c.l.b16 %v742
          %v782 = vunpack.c.l.b16 %v743
          %v783 = vunpack.c.l.b16 %v744
          %v784 = vunpack.c.l.b16 %v745
          %v785 = vunpack.c.l.b16 %v746
          %v786 = vunpack.c.l.b16 %v747
          %v787 = vpack.c.b16 %v772, %v771
          %v788 = vpack.c.b16 %v774, %v773
          %v789 = vpack.c.b16 %v776, %v775
          %v790 = vpack.c.b16 %v778, %v777
          %v791 = vpack.c.b16 %v780, %v779
          %v792 = vpack.c.b16 %v782, %v781
          %v793 = vpack.c.b16 %v784, %v783
          %v794 = vpack.c.b16 %v786, %v785
          %803 = vmatprep.subr.bf16.mxu0 0
          %804 = vmatpush1.bf16.msra.mxu0 %v787
          %805 = vmatprep.subr.bf16.mxu0 0
          %806 = vmatpush1.bf16.msra.mxu0 %v788
          %807 = vmatprep.subr.bf16.mxu0 0
          %808 = vmatpush1.bf16.msra.mxu0 %v789
          %809 = vmatprep.subr.bf16.mxu0 0
          %810 = vmatpush1.bf16.msra.mxu0 %v790
          %811 = vmatprep.subr.bf16.mxu0 0
          %812 = vmatpush1.bf16.msra.mxu0 %v791
          %813 = vmatprep.subr.bf16.mxu0 0
          %814 = vmatpush1.bf16.msra.mxu0 %v792
          %815 = vmatprep.subr.bf16.mxu0 0
          %816 = vmatpush1.bf16.msra.mxu0 %v793
          %817 = vmatprep.subr.bf16.mxu0 0
          %818 = vmatpush1.bf16.msra.mxu0 %v794
          %819 = vmatprep.subr.bf16.mxu0 0
          %820 = vmatpush1.bf16.msra.mxu0 0
          %821 = vmatprep.subr.bf16.mxu0 0
          %822 = vmatpush1.bf16.msra.mxu0 0
          %823 = vmatprep.subr.bf16.mxu0 0
          %824 = vmatpush1.bf16.msra.mxu0 0
          %825 = vmatprep.subr.bf16.mxu0 0
          %826 = vmatpush1.bf16.msra.mxu0 0
          %827 = vmatprep.subr.bf16.mxu0 0
          %828 = vmatpush1.bf16.msra.mxu0 0
          %829 = vmatprep.subr.bf16.mxu0 0
          %830 = vmatpush1.bf16.msra.mxu0 0
          %831 = vmatprep.subr.bf16.mxu0 0
          %832 = vmatpush1.bf16.msra.mxu0 0
          %833 = vmatprep.subr.bf16.mxu0 0
          %834 = vmatpush1.bf16.msra.mxu0 0
          %835 = vmatprep.mubr.bf16.mxu0 0
          %836 = vmatmul.mubr.bf16.gmra.mrb[0].mxu0 %v731
          %v837 = vpop.f32.mrb[0].mxu0
          %v838 = vadd.f32 %v753, %v837
          %v839 = vpop.f32.mrb[0].mxu0
          %v840 = vpop.f32.mrb[0].mxu0
          %v841 = vpop.f32.mrb[0].mxu0
          %842 = vdwg.mxu0
          %843 = vst [vmem:[#allocation3] sm:$0x3] %v838
          %v844 = vpack.c.bf16 %v838, %v838
          %v845 = vld [vmem:[%s5] sm:$0xf]
          %v846 = vld [vmem:[%s5 + $0x4] sm:$0xf]
          %v847 = vld [vmem:[%s5 + $0x8] sm:$0xf]
          %v848 = vld [vmem:[%s5 + $0xc] sm:$0xf]
          %v849 = vld [vmem:[%s5 + $0x10] sm:$0xf]
          %v850 = vld [vmem:[%s5 + $0x14] sm:$0xf]
          %v851 = vld [vmem:[%s5 + $0x18] sm:$0xf]
          %v852 = vld [vmem:[%s5 + $0x1c] sm:$0xf]
          %v853 = vld [vmem:[%s5 + $0x20] sm:$0xf]
          %v854 = vld [vmem:[%s5 + $0x24] sm:$0xf]
          %v855 = vld [vmem:[%s5 + $0x28] sm:$0xf]
          %v856 = vld [vmem:[%s5 + $0x2c] sm:$0xf]
          %v857 = vld [vmem:[%s5 + $0x30] sm:$0xf]
          %v858 = vld [vmem:[%s5 + $0x34] sm:$0xf]
          %v859 = vld [vmem:[%s5 + $0x38] sm:$0xf]
          %v860 = vld [vmem:[%s5 + $0x3c] sm:$0xf]
          %v861 = vld [vmem:[%s6] sm:$0x1]
          %v863 = vlaneseq
          %v864 = vshrl.u32 %v863, 7
          %v865 = vsub.s32 0, %v864
          %v866 = vrot.slane %v861, %v865
          %v884 = vunpack.c.l.b16 %v845
          %v885 = vunpack.c.l.b16 %v846
          %v886 = vunpack.c.l.b16 %v847
          %v887 = vunpack.c.l.b16 %v848
          %v888 = vunpack.c.l.b16 %v849
          %v889 = vunpack.c.l.b16 %v850
          %v890 = vunpack.c.l.b16 %v851
          %v891 = vunpack.c.l.b16 %v852
          %v892 = vunpack.c.l.b16 %v853
          %v893 = vunpack.c.l.b16 %v854
          %v894 = vunpack.c.l.b16 %v855
          %v895 = vunpack.c.l.b16 %v856
          %v896 = vunpack.c.l.b16 %v857
          %v897 = vunpack.c.l.b16 %v858
          %v898 = vunpack.c.l.b16 %v859
          %v899 = vunpack.c.l.b16 %v860
          %v900 = vpack.c.b16 %v885, %v884
          %v901 = vpack.c.b16 %v887, %v886
          %v902 = vpack.c.b16 %v889, %v888
          %v903 = vpack.c.b16 %v891, %v890
          %v904 = vpack.c.b16 %v893, %v892
          %v905 = vpack.c.b16 %v895, %v894
          %v906 = vpack.c.b16 %v897, %v896
          %v907 = vpack.c.b16 %v899, %v898
          %916 = vmatprep.subr.bf16.mxu0 0
          %917 = vmatpush1.bf16.msra.mxu0 %v900
          %918 = vmatprep.subr.bf16.mxu0 0
          %919 = vmatpush1.bf16.msra.mxu0 %v901
          %920 = vmatprep.subr.bf16.mxu0 0
          %921 = vmatpush1.bf16.msra.mxu0 %v902
          %922 = vmatprep.subr.bf16.mxu0 0
          %923 = vmatpush1.bf16.msra.mxu0 %v903
          %924 = vmatprep.subr.bf16.mxu0 0
          %925 = vmatpush1.bf16.msra.mxu0 %v904
          %926 = vmatprep.subr.bf16.mxu0 0
          %927 = vmatpush1.bf16.msra.mxu0 %v905
          %928 = vmatprep.subr.bf16.mxu0 0
          %929 = vmatpush1.bf16.msra.mxu0 %v906
          %930 = vmatprep.subr.bf16.mxu0 0
          %931 = vmatpush1.bf16.msra.mxu0 %v907
          %932 = vmatprep.subr.bf16.mxu0 0
          %933 = vmatpush1.bf16.msra.mxu0 0
          %934 = vmatprep.subr.bf16.mxu0 0
          %935 = vmatpush1.bf16.msra.mxu0 0
          %936 = vmatprep.subr.bf16.mxu0 0
          %937 = vmatpush1.bf16.msra.mxu0 0
          %938 = vmatprep.subr.bf16.mxu0 0
          %939 = vmatpush1.bf16.msra.mxu0 0
          %940 = vmatprep.subr.bf16.mxu0 0
          %941 = vmatpush1.bf16.msra.mxu0 0
          %942 = vmatprep.subr.bf16.mxu0 0
          %943 = vmatpush1.bf16.msra.mxu0 0
          %944 = vmatprep.subr.bf16.mxu0 0
          %945 = vmatpush1.bf16.msra.mxu0 0
          %946 = vmatprep.subr.bf16.mxu0 0
          %947 = vmatpush1.bf16.msra.mxu0 0
          %948 = vmatprep.mubr.bf16.mxu0 0
          %949 = vmatmul.mubr.bf16.gmra.mrb[0].mxu0 %v844
          %v950 = vpop.f32.mrb[0].mxu0
          %v951 = vadd.f32 %v866, %v950
          %v952 = vpop.f32.mrb[0].mxu0
          %v953 = vpop.f32.mrb[0].mxu0
          %v954 = vpop.f32.mrb[0].mxu0
          %955 = vdwg.mxu0
          %956 = vst [vmem:[#allocation5] sm:$0x3] %v951
        $region52: #{embedding_model_conv_forward.1} parent=47 // pred_fallthru
          _
        // Predicated region
        $region53: #{embedding_model_conv_forward.1} parent=47 // pred_check
          %p957 = pneg %p187
        $region54: #{embedding_model_conv_forward.1} parent=47 // pred_check_branch
          %959 = sbr.rel (%p957) target = $region56
        $region55: #{embedding_model_conv_forward.1} parent=47 // pred_region
          %s961 = ssub.s32 32, 32
          %962 = vsyncadd [#allocation4], %s961
          %s964 = sshll.u32 [#allocation3], 4
          %s965 = int_to_ptr.vmem [resolvable:$true] %s964
          %967 = dma.vmem_to_hbm [thread:$0]  %s965, 32, %s7, [#allocation4]
        $region56: #{embedding_model_conv_forward.1} parent=47 // pred_fallthru
          _
        // Predicated region
        $region57: #{embedding_model_conv_forward.1} parent=47 // pred_check
          %p968 = pneg %p208
        $region58: #{embedding_model_conv_forward.1} parent=47 // pred_check_branch
          %970 = sbr.rel (%p968) target = $region60
        $region59: #{embedding_model_conv_forward.1} parent=47 // pred_region
          %s972 = ssub.s32 32, 32
          %973 = vsyncadd [#allocation6], %s972
          %s975 = sshll.u32 [#allocation5], 4
          %s976 = int_to_ptr.vmem [resolvable:$true] %s975
          %978 = dma.vmem_to_hbm [thread:$0]  %s976, 32, %s8, [#allocation6]
        $region60: #{embedding_model_conv_forward.1} parent=47 // pred_fallthru
          _
        // Predicated region
        $region61: #{embedding_model_conv_forward.1} parent=47 // pred_check
          %p979 = pneg %p187
        $region62: #{embedding_model_conv_forward.1} parent=47 // pred_check_branch
          %981 = sbr.rel (%p979) target = $region64
        $region63: #{embedding_model_conv_forward.1} parent=47 // pred_region
          %982 = dma.done [#allocation4], 32
        $region64: #{embedding_model_conv_forward.1} parent=47 // pred_fallthru
          _
        // Predicated region
        $region65: #{embedding_model_conv_forward.1} parent=47 // pred_check
          %p983 = pneg %p208
        $region66: #{embedding_model_conv_forward.1} parent=47 // pred_check_branch
          %985 = sbr.rel (%p983) target = $region68
        $region67: #{embedding_model_conv_forward.1} parent=47 // pred_region
          %986 = dma.done [#allocation6], 32
        $region68: #{embedding_model_conv_forward.1} parent=47 // pred_fallthru
          _
      $region48: #{embedding_model_conv_forward.1} parent=5 // pred_fallthru
        _
      %p987 = scmp.le.s32.totalorder 2, %s17
      // Predicated region
      $region69: #{embedding_model_conv_forward.1} parent=5 // pred_check
        %p988 = pneg %p987
      $region70: #{embedding_model_conv_forward.1} parent=5 // pred_check_branch
        %990 = sbr.rel (%p988) target = $region72
      $region71: #{embedding_model_conv_forward.1} parent=5 // pred_region
        %s991 = ssub.s32 %s17, 2
      $region72: #{embedding_model_conv_forward.1} parent=5 // pred_fallthru
        _
    $region6: #{embedding_model_conv_forward.1} parent=1 // loop_footer
      %s21 = sadd.s32 1, %s17
    $region7: #{embedding_model_conv_forward.1} parent=1 // loop_footer_branch
      %16 = sbr.rel target = $region3
    $region8: #{embedding_model_conv_forward.1} parent=1 // loop_exit
      _
    %992 = vsyncpa [#allocation4], 1
    %s993 = scalar_lea.sflag [#allocation4], 1
    %994 = vsyncpa %s993, 1
    %995 = vsyncpa [#allocation6], 1

</llo_original>
